<compile_context>
chip_gen: v5e
topology: v5e:2x2
jax: 0.10.0
libtpu: 0.0.40
codegen_flags: <defaults>
</compile_context>

<pallas_src>
import jax
import jax.numpy as jnp
from jax.experimental import pallas as pl
from jax.experimental.pallas import tpu as pltpu

BN_EPS = 1e-5
N_BLOCKS = 4          # DNet1 = 4 DBlocks + a final Linear
LANE = 128            # lane width / per-layer slot size in the packed weight & bias


def _round_up(x, m):
    return ((x + m - 1) // m) * m


def fold_params(params):
    """Fold eval-mode BatchNorm1d into the preceding Linear: W' = W*s, b' = b*s + t."""
    blocks = []
    for (w, b, s, t) in params["blocks"]:
        blocks.append((w * s, b * s + t))
    return blocks, params["out_w"], params["out_b"]


def dnet1_forward(x, params, *, tile_b_cap=2048):
    blocks, out_w, out_b = fold_params(params)
    B, n_feature = x.shape
    n_output = out_w.shape[1]
    n_layers = N_BLOCKS + 1

    # Packed layout assumes each layer width fits one 128-lane slot (true for DNet1 sizes).
    assert n_feature <= LANE, "n_feature > 128 not supported by packed-weight layout"
    assert all(w.shape[1] <= LANE for (w, _) in blocks), "hidden width > 128 would overlap slots"
    assert n_output <= LANE, "n_output > 128 not supported by packed-weight layout"

    # ---- pack all folded weights / biases into single lane-aligned tensors (one DMA each).
    #      (In a real deployment this packing is done once at load time, not per call.)
    w_pack = jnp.zeros((n_layers, LANE, LANE), jnp.float32)
    b_pack = jnp.zeros((1, n_layers * LANE), jnp.float32)
    for k, (w, b) in enumerate(blocks + [(out_w, out_b)]):
        w_pack = w_pack.at[k, :w.shape[0], :w.shape[1]].set(w)
        b_pack = b_pack.at[:, k * LANE:k * LANE + b.shape[1]].set(b)
    w_pack = w_pack.astype(jnp.bfloat16)           # MXU-native operand, f32 accumulation

    # ---- batch tiling: few big steps; keep >= 2 steps when possible (v7x megacore).
    tile_b = min(_round_up(tile_b_cap, LANE), _round_up(B, LANE))
    if pl.cdiv(B, tile_b) == 1 and B > LANE:
        tile_b = _round_up(pl.cdiv(B, 2), LANE)
    n_steps = pl.cdiv(B, tile_b)

    def kernel(x_ref, w_ref, b_ref, out_ref):
        # x tile (tile_b, n_feature) f32 -> bf16 for the MXU.
        h = x_ref[...].astype(jnp.bfloat16)
        # Layer 0: only the first n_feature rows of w_pack[0] are non-zero.
        h = jnp.dot(h, w_ref[0, :n_feature, :], preferred_element_type=jnp.float32)
        h = jnp.maximum((h + b_ref[:, 0:LANE]).astype(jnp.bfloat16), jnp.bfloat16(0))
        for k in range(1, N_BLOCKS):
            # h is a full 128-lane bf16 block; zero-padded K rows / N cols contribute 0.
            h = jnp.dot(h, w_ref[k], preferred_element_type=jnp.float32)
            h = jnp.maximum(
                (h + b_ref[:, k * LANE:(k + 1) * LANE]).astype(jnp.bfloat16),
                jnp.bfloat16(0))
            # TODO(synk): Dropout is identity in eval mode; training-mode dropout not implemented.
        acc = jnp.dot(h, w_ref[N_BLOCKS], preferred_element_type=jnp.float32)
        acc = acc + b_ref[:, N_BLOCKS * LANE:(N_BLOCKS + 1) * LANE]
        # Transposed, lane-dense store: (n_output, tile_b) f32, batch on the lane axis.
        out_ref[...] = acc.T[:n_output, :]

    out_t = pl.pallas_call(
        kernel,
        out_shape=jax.ShapeDtypeStruct((n_output, B), jnp.float32),
        grid=(n_steps,),
        in_specs=[
            pl.BlockSpec((tile_b, n_feature), lambda i: (i, 0)),     # batch tile of x
            pl.BlockSpec(w_pack.shape, lambda i: (0, 0, 0)),         # VMEM-resident weights
            pl.BlockSpec(b_pack.shape, lambda i: (0, 0)),            # VMEM-resident biases
        ],
        out_specs=pl.BlockSpec((n_output, tile_b), lambda i: (0, i)),
        compiler_params=pltpu.CompilerParams(dimension_semantics=("parallel",)),
    )(x, w_pack, b_pack)
    return out_t.T                                                   # (B, n_output), tiny copy


def init_params(key, dims):
    """dims = (n_feature, h1, h2, h3, h4, n_output). PyTorch-style uniform init;
    eval-mode BN running stats expressed as per-feature (scale, shift)."""
    keys = jax.random.split(key, N_BLOCKS * 6 + 2)
    blocks = []
    ki = 0
    for i in range(N_BLOCKS):
        n_in, n_out = dims[i], dims[i + 1]
        bound = 1.0 / jnp.sqrt(jnp.float32(n_in))
        w = jax.random.uniform(keys[ki], (n_in, n_out), jnp.float32, -bound, bound); ki += 1
        b = jax.random.uniform(keys[ki], (1, n_out), jnp.float32, -bound, bound); ki += 1
        gamma = jax.random.uniform(keys[ki], (1, n_out), jnp.float32, 0.5, 1.5); ki += 1
        beta = jax.random.uniform(keys[ki], (1, n_out), jnp.float32, -0.5, 0.5); ki += 1
        r_mean = 0.1 * jax.random.normal(keys[ki], (1, n_out), jnp.float32); ki += 1
        r_var = jax.random.uniform(keys[ki], (1, n_out), jnp.float32, 0.5, 1.5); ki += 1
        scale = gamma / jnp.sqrt(r_var + BN_EPS)       # BN(eval) as per-feature scale/shift
        shift = beta - r_mean * scale
        blocks.append((w, b, scale, shift))
    n_in, n_out = dims[N_BLOCKS], dims[N_BLOCKS + 1]
    bound = 1.0 / jnp.sqrt(jnp.float32(n_in))
    w_out = jax.random.uniform(keys[ki], (n_in, n_out), jnp.float32, -bound, bound); ki += 1
    b_out = jax.random.uniform(keys[ki], (1, n_out), jnp.float32, -bound, bound)
    return {"blocks": blocks, "out_w": w_out, "out_b": b_out}


def dnet1_ref_f32(x, params):
    """Pure-f32 JAX reference of DNet1 eval forward (PyTorch semantics)."""
    h = x
    for (w, b, s, t) in params["blocks"]:
        h = jnp.maximum((h @ w + b) * s + t, 0.0)
    return h @ params["out_w"] + params["out_b"]


def dnet1_ref_matched(x, params):
    """JAX reference mirroring the kernel numerics (folded BN, bf16 matmul operands, f32 accum)."""
    blocks, out_w, out_b = fold_params(params)
    h = x.astype(jnp.bfloat16)
    for (w, b) in blocks:
        h = jnp.dot(h, w.astype(jnp.bfloat16), preferred_element_type=jnp.float32) + b
        h = jnp.maximum(h, 0.0).astype(jnp.bfloat16)
    return jnp.dot(h, out_w.astype(jnp.bfloat16), preferred_element_type=jnp.float32) + out_b


if __name__ == "__main__":
    # DNet1(n_feature=16, n_hidden1..4=32, n_output=8); batch=256 -> 2 parallel grid steps
    # of tile_b=128 (both TensorCores used on v7x; negligible extra step cost on v5e/v6e).
    dims = (16, 32, 32, 32, 32, 8)
    batch = 256

    key = jax.random.PRNGKey(0)
    k_x, k_p = jax.random.split(key)
    x = jax.random.normal(k_x, (batch, dims[0]), jnp.float32)
    params = init_params(k_p, dims)

    out = jax.block_until_ready(dnet1_forward(x, params))
    assert out.shape == (batch, dims[-1])

    ref_m = dnet1_ref_matched(x, params)
    assert jnp.allclose(out, ref_m, atol=1e-3, rtol=1e-3), "mismatch vs bf16-matched reference"

    ref_f = dnet1_ref_f32(x, params)
    assert jnp.allclose(out, ref_f, atol=5e-2, rtol=5e-2), "mismatch vs f32 PyTorch-semantics reference"

    print("KERNEL_OK")
</pallas_src>

<mosaic_0001>
module attributes {stable_mosaic.version = 11 : i64} {
  func.func @kernel(%arg0: i32, %arg1: memref<128x16xf32, #tpu.memory_space<vmem>>, %arg2: memref<5x128x128xbf16, #tpu.memory_space<vmem>>, %arg3: memref<1x640xf32, #tpu.memory_space<vmem>>, %arg4: memref<8x128xf32, #tpu.memory_space<vmem>>) attributes {dimension_semantics = [#tpu.dimension_semantics<parallel>], iteration_bounds = array<i64: 2>, scalar_prefetch = 0 : i64, scratch_operands = 0 : i64, tpu.core_type = #tpu.core_type<tc>, window_params = [{transform_indices = @transform_0, window_bounds = array<i64: 128, 16>}, {pipeline_mode = #tpu.pipeline_mode<synchronous>, transform_indices = @transform_1, window_bounds = array<i64: 5, 128, 128>}, {pipeline_mode = #tpu.pipeline_mode<synchronous>, transform_indices = @transform_2, window_bounds = array<i64: 1, 640>}, {transform_indices = @transform_3, window_bounds = array<i64: 8, 128>}]} {
    %c0 = arith.constant 0 : index
    %c0_0 = arith.constant 0 : index
    %0 = vector.load %arg1[%c0, %c0_0] : memref<128x16xf32, #tpu.memory_space<vmem>>, vector<128x16xf32>
    %1 = arith.truncf %0 : vector<128x16xf32> to vector<128x16xbf16>
    %c0_1 = arith.constant 0 : index
    %c0_2 = arith.constant 0 : index
    %c0_3 = arith.constant 0 : index
    %2 = vector.load %arg2[%c0_1, %c0_2, %c0_3] : memref<5x128x128xbf16, #tpu.memory_space<vmem>>, vector<1x16x128xbf16>
    %3 = vector.shape_cast %2 : vector<1x16x128xbf16> to vector<16x128xbf16>
    %cst = arith.constant dense<0.000000e+00> : vector<128x128xf32>
    %4 = tpu.matmul %1, %3, %cst {dimension_numbers = #tpu.dot_dimension_numbers<[1], [0], [0], [1], [0, 0, 1, 1], [], []>} : vector<128x16xbf16>, vector<16x128xbf16>, vector<128x128xf32> -> vector<128x128xf32>
    %c0_4 = arith.constant 0 : index
    %c0_5 = arith.constant 0 : index
    %5 = vector.load %arg3[%c0_4, %c0_5] : memref<1x640xf32, #tpu.memory_space<vmem>>, vector<1x128xf32>
    %6 = vector.broadcast %5 : vector<1x128xf32> to vector<128x128xf32>
    %7 = arith.addf %4, %6 : vector<128x128xf32>
    %8 = arith.truncf %7 : vector<128x128xf32> to vector<128x128xbf16>
    %cst_6 = arith.constant 0.000000e+00 : bf16
    %9 = vector.broadcast %cst_6 : bf16 to vector<128x128xbf16>
    %10 = arith.maximumf %8, %9 : vector<128x128xbf16>
    %c1 = arith.constant 1 : index
    %c0_7 = arith.constant 0 : index
    %c0_8 = arith.constant 0 : index
    %11 = vector.load %arg2[%c1, %c0_7, %c0_8] : memref<5x128x128xbf16, #tpu.memory_space<vmem>>, vector<1x128x128xbf16>
    %12 = vector.shape_cast %11 : vector<1x128x128xbf16> to vector<128x128xbf16>
    %cst_9 = arith.constant dense<0.000000e+00> : vector<128x128xf32>
    %13 = tpu.matmul %10, %12, %cst_9 {dimension_numbers = #tpu.dot_dimension_numbers<[1], [0], [0], [1], [0, 0, 1, 1], [], []>} : vector<128x128xbf16>, vector<128x128xbf16>, vector<128x128xf32> -> vector<128x128xf32>
    %c0_10 = arith.constant 0 : index
    %c128 = arith.constant 128 : index
    %14 = vector.load %arg3[%c0_10, %c128] : memref<1x640xf32, #tpu.memory_space<vmem>>, vector<1x128xf32>
    %15 = vector.broadcast %14 : vector<1x128xf32> to vector<128x128xf32>
    %16 = arith.addf %13, %15 : vector<128x128xf32>
    %17 = arith.truncf %16 : vector<128x128xf32> to vector<128x128xbf16>
    %cst_11 = arith.constant 0.000000e+00 : bf16
    %18 = vector.broadcast %cst_11 : bf16 to vector<128x128xbf16>
    %19 = arith.maximumf %17, %18 : vector<128x128xbf16>
    %c2 = arith.constant 2 : index
    %c0_12 = arith.constant 0 : index
    %c0_13 = arith.constant 0 : index
    %20 = vector.load %arg2[%c2, %c0_12, %c0_13] : memref<5x128x128xbf16, #tpu.memory_space<vmem>>, vector<1x128x128xbf16>
    %21 = vector.shape_cast %20 : vector<1x128x128xbf16> to vector<128x128xbf16>
    %cst_14 = arith.constant dense<0.000000e+00> : vector<128x128xf32>
    %22 = tpu.matmul %19, %21, %cst_14 {dimension_numbers = #tpu.dot_dimension_numbers<[1], [0], [0], [1], [0, 0, 1, 1], [], []>} : vector<128x128xbf16>, vector<128x128xbf16>, vector<128x128xf32> -> vector<128x128xf32>
    %c0_15 = arith.constant 0 : index
    %c256 = arith.constant 256 : index
    %23 = vector.load %arg3[%c0_15, %c256] : memref<1x640xf32, #tpu.memory_space<vmem>>, vector<1x128xf32>
    %24 = vector.broadcast %23 : vector<1x128xf32> to vector<128x128xf32>
    %25 = arith.addf %22, %24 : vector<128x128xf32>
    %26 = arith.truncf %25 : vector<128x128xf32> to vector<128x128xbf16>
    %cst_16 = arith.constant 0.000000e+00 : bf16
    %27 = vector.broadcast %cst_16 : bf16 to vector<128x128xbf16>
    %28 = arith.maximumf %26, %27 : vector<128x128xbf16>
    %c3 = arith.constant 3 : index
    %c0_17 = arith.constant 0 : index
    %c0_18 = arith.constant 0 : index
    %29 = vector.load %arg2[%c3, %c0_17, %c0_18] : memref<5x128x128xbf16, #tpu.memory_space<vmem>>, vector<1x128x128xbf16>
    %30 = vector.shape_cast %29 : vector<1x128x128xbf16> to vector<128x128xbf16>
    %cst_19 = arith.constant dense<0.000000e+00> : vector<128x128xf32>
    %31 = tpu.matmul %28, %30, %cst_19 {dimension_numbers = #tpu.dot_dimension_numbers<[1], [0], [0], [1], [0, 0, 1, 1], [], []>} : vector<128x128xbf16>, vector<128x128xbf16>, vector<128x128xf32> -> vector<128x128xf32>
    %c0_20 = arith.constant 0 : index
    %c384 = arith.constant 384 : index
    %32 = vector.load %arg3[%c0_20, %c384] : memref<1x640xf32, #tpu.memory_space<vmem>>, vector<1x128xf32>
    %33 = vector.broadcast %32 : vector<1x128xf32> to vector<128x128xf32>
    %34 = arith.addf %31, %33 : vector<128x128xf32>
    %35 = arith.truncf %34 : vector<128x128xf32> to vector<128x128xbf16>
    %cst_21 = arith.constant 0.000000e+00 : bf16
    %36 = vector.broadcast %cst_21 : bf16 to vector<128x128xbf16>
    %37 = arith.maximumf %35, %36 : vector<128x128xbf16>
    %c4 = arith.constant 4 : index
    %c0_22 = arith.constant 0 : index
    %c0_23 = arith.constant 0 : index
    %38 = vector.load %arg2[%c4, %c0_22, %c0_23] : memref<5x128x128xbf16, #tpu.memory_space<vmem>>, vector<1x128x128xbf16>
    %39 = vector.shape_cast %38 : vector<1x128x128xbf16> to vector<128x128xbf16>
    %cst_24 = arith.constant dense<0.000000e+00> : vector<128x128xf32>
    %40 = tpu.matmul %37, %39, %cst_24 {dimension_numbers = #tpu.dot_dimension_numbers<[1], [0], [0], [1], [0, 0, 1, 1], [], []>} : vector<128x128xbf16>, vector<128x128xbf16>, vector<128x128xf32> -> vector<128x128xf32>
    %c0_25 = arith.constant 0 : index
    %c512 = arith.constant 512 : index
    %41 = vector.load %arg3[%c0_25, %c512] : memref<1x640xf32, #tpu.memory_space<vmem>>, vector<1x128xf32>
    %42 = vector.broadcast %41 : vector<1x128xf32> to vector<128x128xf32>
    %43 = arith.addf %40, %42 : vector<128x128xf32>
    %44 = tpu.transpose %43, [1, 0] : vector<128x128xf32> -> vector<128x128xf32>
    %45 = vector.extract_strided_slice %44 {offsets = [0, 0], sizes = [8, 128], strides = [1, 1]} : vector<128x128xf32> to vector<8x128xf32>
    %c0_26 = arith.constant 0 : index
    %c0_27 = arith.constant 0 : index
    %46 = vector.load %arg4[%c0_26, %c0_27] : memref<8x128xf32, #tpu.memory_space<vmem>>, vector<8x128xf32>
    tpu.vector_store %arg4[%c0_26, %c0_27], %45 {strides = array<i32>} : memref<8x128xf32, #tpu.memory_space<vmem>>, vector<8x128xf32>,
    return
  }
  func.func @transform_0(%arg0: i32) -> (i32, i32) {
    %c0_i32 = arith.constant 0 : i32
    %c0_i32_0 = arith.constant 0 : i32
    return %arg0, %c0_i32 : i32, i32
  }
  func.func @transform_1(%arg0: i32) -> (i32, i32, i32) {
    %c0_i32 = arith.constant 0 : i32
    %c0_i32_0 = arith.constant 0 : i32
    %c0_i32_1 = arith.constant 0 : i32
    %c0_i32_2 = arith.constant 0 : i32
    return %c0_i32, %c0_i32_0, %c0_i32_1 : i32, i32, i32
  }
  func.func @transform_2(%arg0: i32) -> (i32, i32) {
    %c0_i32 = arith.constant 0 : i32
    %c0_i32_0 = arith.constant 0 : i32
    %c0_i32_1 = arith.constant 0 : i32
    return %c0_i32, %c0_i32_0 : i32, i32
  }
  func.func @transform_3(%arg0: i32) -> (i32, i32) {
    %c0_i32 = arith.constant 0 : i32
    %c0_i32_0 = arith.constant 0 : i32
    return %c0_i32, %arg0 : i32, i32
  }
}

</mosaic_0001>

<llo_original>
// kernel: tpu_custom_call.1
$region0: #{tpu_custom_call.1}
  #allocation0 [shape = 'u32[]', space=smem, size = 0x4, offset = 0x4, fixed_abs, tag = 'smem constant byte address 0x4 - core index']
  #allocation1 [shape = 'u32[72,128]{1,0:T(1,128)}', space=vmem, size = 0x9000, scoped, tag = 'internal scratch']
  %s0 = inlined_call_operand.vmem [shape: f32[256,16], index: 0, kind: input, shape index: {}]
  %s1 = inlined_call_operand.hbm [shape: bf16[5,128,128], index: 1, kind: input, shape index: {}]
  %s2 = inlined_call_operand.vmem [shape: f32[1,640], index: 2, kind: input, shape index: {}]
  %s3 = inlined_call_operand.hbm [shape: f32[8,256], index: 3, kind: output, shape index: {}]
  %s4 = sld [smem:[#allocation0]]
  $region49: #{tpu_custom_call.1} parent=0
    _
  %s6 = ssub.s32 1, %s4
  %s7 = scalar_select 0, %s6, %s4
  $region1: #{tpu_custom_call.1} parent=0
    #allocation2 [shape = 'u8[163840]{0}', space=vmem, size = 0x28000, scoped, tag = 'input window, operand 1, single buffered']
    #allocation3 [shape = 's32[2]{0}', space=sflag, size = 0x8, scoped, tag = 'scoped memory for tpu_custom_call.1']
    #allocation4 [shape = 's32[2]{0}', space=sflag, size = 0x8, scoped, tag = 'scoped memory for tpu_custom_call.1']
    #allocation5 [shape = 'u8[8192]{0}', space=vmem, size = 0x2000, scoped, tag = 'output window, operand 0']
    %8 = vsyncpa [#allocation3], 0
    %9 = vsyncpa [#allocation4], 0
    %s10 = scalar_lea.sflag [#allocation4], 1
    %11 = vsyncpa %s10, 0
    loop: start=0, step=1, limit=4
    $region2: #{tpu_custom_call.1} parent=1 // loop_pre_header
      _
    $region3: #{tpu_custom_call.1} parent=1 // loop_header
      %s13 = sphi 0, %s17
      %p14 = scmp.ge.s32.totalorder %s13, 4
      %s23 = sphi 0, %s25
      %s26 = sphi 0, %s23
      %s27 = sphi 0, %s26
      %s43 = sphi 0, %s27
      %s47 = sphi 0, %s47
      %s49 = sphi 0, %s47
      %s50 = sphi 0, %s49
      %s64 = sphi 0, %s50
      %s68 = sphi 0, %s68
      %s70 = sphi 0, %s68
      %s71 = sphi 0, %s70
      %s85 = sphi 0, %s71
      %s91 = sphi 0, %s93
      %s94 = sphi 0, %s91
      %s95 = sphi 0, %s94
      %s111 = sphi 0, %s95
    $region4: #{tpu_custom_call.1} parent=1 // loop_header_branch
      %16 = sbr.rel (%p14) target = $region8
    $region5: #{tpu_custom_call.1} parent=1 // loop_body
      %s18 = ssub.s32 %s13, 1
      %s19 = ssub.s32 %s13, 2
      %s20 = sadd.s32 %s13, 1
      %s21 = ssub.s32 %s13, %s20
      %p22 = scmp.eq.s32.totalorder %s21, 0
      %s24 = sadd.s32 %s23, 1
      %s25 = scalar_select %p22, %s23, %s24
      %p28 = pneg %p22
      %p29 = scmp.eq.s32.totalorder %s13, 1
      %p30 = por %p28, %p29
      %p31 = scmp.ne.s32.totalorder %s23, %s26
      %p32 = scmp.eq.s32.totalorder %s13, 0
      %p33 = por %p31, %p32
      %p34 = scmp.ne.s32.totalorder %s23, %s26
      %p35 = scmp.eq.s32.totalorder %s18, 1
      %p36 = por %p34, %p35
      %p37 = scmp.ne.s32.totalorder %s26, %s27
      %p38 = scmp.eq.s32.totalorder %s18, 0
      %p39 = por %p37, %p38
      %p40 = scmp.ne.s32.totalorder %s26, %s27
      %p41 = scmp.eq.s32.totalorder %s19, 1
      %p42 = por %p40, %p41
      %p44 = scmp.ne.s32.totalorder %s27, %s43
      %p45 = scmp.eq.s32.totalorder %s19, 0
      %p46 = por %p44, %p45
      %s48 = sadd.s32 %s47, 1
      %p51 = scmp.eq.s32.totalorder %s13, 1
      %p52 = scmp.ne.s32.totalorder %s47, %s49
      %p53 = scmp.eq.s32.totalorder %s13, 0
      %p54 = por %p52, %p53
      %p55 = scmp.ne.s32.totalorder %s47, %s49
      %p56 = scmp.eq.s32.totalorder %s18, 1
      %p57 = por %p55, %p56
      %p58 = scmp.ne.s32.totalorder %s49, %s50
      %p59 = scmp.eq.s32.totalorder %s18, 0
      %p60 = por %p58, %p59
      %p61 = scmp.ne.s32.totalorder %s49, %s50
      %p62 = scmp.eq.s32.totalorder %s19, 1
      %p63 = por %p61, %p62
      %p65 = scmp.ne.s32.totalorder %s50, %s64
      %p66 = scmp.eq.s32.totalorder %s19, 0
      %p67 = por %p65, %p66
      %s69 = sadd.s32 %s68, 1
      %p72 = scmp.eq.s32.totalorder %s13, 1
      %p73 = scmp.ne.s32.totalorder %s68, %s70
      %p74 = scmp.eq.s32.totalorder %s13, 0
      %p75 = por %p73, %p74
      %p76 = scmp.ne.s32.totalorder %s68, %s70
      %p77 = scmp.eq.s32.totalorder %s18, 1
      %p78 = por %p76, %p77
      %p79 = scmp.ne.s32.totalorder %s70, %s71
      %p80 = scmp.eq.s32.totalorder %s18, 0
      %p81 = por %p79, %p80
      %p82 = scmp.ne.s32.totalorder %s70, %s71
      %p83 = scmp.eq.s32.totalorder %s19, 1
      %p84 = por %p82, %p83
      %p86 = scmp.ne.s32.totalorder %s71, %s85
      %p87 = scmp.eq.s32.totalorder %s19, 0
      %p88 = por %p86, %p87
      %s89 = ssub.s32 %s13, %s20
      %p90 = scmp.eq.s32.totalorder %s89, 0
      %s92 = sadd.s32 %s91, 1
      %s93 = scalar_select %p90, %s91, %s92
      %p96 = pneg %p90
      %p97 = scmp.eq.s32.totalorder %s13, 1
      %p98 = por %p96, %p97
      %p99 = scmp.ne.s32.totalorder %s91, %s94
      %p100 = scmp.eq.s32.totalorder %s13, 0
      %p101 = por %p99, %p100
      %p102 = scmp.ne.s32.totalorder %s91, %s94
      %p103 = scmp.eq.s32.totalorder %s18, 1
      %p104 = por %p102, %p103
      %p105 = scmp.ne.s32.totalorder %s94, %s95
      %p106 = scmp.eq.s32.totalorder %s18, 0
      %p107 = por %p105, %p106
      %p108 = scmp.ne.s32.totalorder %s94, %s95
      %p109 = scmp.eq.s32.totalorder %s19, 1
      %p110 = por %p108, %p109
      %p112 = scmp.ne.s32.totalorder %s95, %s111
      %p113 = scmp.eq.s32.totalorder %s19, 0
      %p114 = por %p112, %p113
      %p115 = scmp.le.s32.totalorder 1, %s13
      %p116 = scmp.lt.s32.totalorder %s13, 3
      %p117 = pnand %p115, %p116
      %p118 = pneg %p117
      // Predicated region
      $region9: #{tpu_custom_call.1} parent=5 // pred_check
        _
      $region10: #{tpu_custom_call.1} parent=5 // pred_check_branch
        %120 = sbr.rel (%p117) target = $region12
      $region11: #{tpu_custom_call.1} parent=5 // pred_region
        %s121 = ssub.s32 %s13, 1
        // Predicated region
        $region13: #{tpu_custom_call.1} parent=11 // pred_check
          %p122 = pneg %p60
        $region14: #{tpu_custom_call.1} parent=11 // pred_check_branch
          %124 = sbr.rel (%p122) target = $region16
        $region15: #{tpu_custom_call.1} parent=11 // pred_region
          %126 = vsyncadd [#allocation3], 0
          %s127 = sshll.u32 %s1, 4
          %s128 = int_to_ptr.hbm [resolvable:$true] %s127
          %s129 = sshll.u32 [#allocation2], 4
          %s130 = int_to_ptr.vmem [resolvable:$true] %s129
          %135 = dma.hbm_to_vmem [thread:$0]  %s128, 5120, %s130, [#allocation3], 64, 64, 4
        $region16: #{tpu_custom_call.1} parent=11 // pred_fallthru
          _
        // Predicated region
        $region17: #{tpu_custom_call.1} parent=11 // pred_check
          %p136 = pneg %p81
        $region18: #{tpu_custom_call.1} parent=11 // pred_check_branch
          %138 = sbr.rel (%p136) target = $region20
        $region19: #{tpu_custom_call.1} parent=11 // pred_region
          _
        $region20: #{tpu_custom_call.1} parent=11 // pred_fallthru
          _
      $region12: #{tpu_custom_call.1} parent=5 // pred_fallthru
        _
      %p139 = scmp.lt.s32.totalorder %s13, 2
      // Predicated region
      $region21: #{tpu_custom_call.1} parent=5 // pred_check
        %p140 = pneg %p139
      $region22: #{tpu_custom_call.1} parent=5 // pred_check_branch
        %142 = sbr.rel (%p140) target = $region24
      $region23: #{tpu_custom_call.1} parent=5 // pred_region
        // Predicated region
        $region25: #{tpu_custom_call.1} parent=23 // pred_check
          %p143 = pneg %p33
        $region26: #{tpu_custom_call.1} parent=23 // pred_check_branch
          %145 = sbr.rel (%p143) target = $region28
        $region27: #{tpu_custom_call.1} parent=23 // pred_region
          %s146 = smul.u32 16, %s13
          %p147 = scmp.lt.s32.totalorder %s146, 31
          %s148 = scalar_select %p147, %s146, 31
          %s149 = smul.addr %s148, 8
          %s150 = scalar_lea.vmem %s0, %s149
          %s151 = smul.u32 16, %s13
        $region28: #{tpu_custom_call.1} parent=23 // pred_fallthru
          _
      $region24: #{tpu_custom_call.1} parent=5 // pred_fallthru
        _
      %p152 = scmp.le.s32.totalorder 1, %s13
      %p153 = scmp.lt.s32.totalorder %s13, 3
      %p154 = pnand %p152, %p153
      %p155 = pneg %p154
      // Predicated region
      $region29: #{tpu_custom_call.1} parent=5 // pred_check
        _
      $region30: #{tpu_custom_call.1} parent=5 // pred_check_branch
        %157 = sbr.rel (%p154) target = $region32
      $region31: #{tpu_custom_call.1} parent=5 // pred_region
        %s158 = ssub.s32 %s13, 1
        // Predicated region
        $region33: #{tpu_custom_call.1} parent=31 // pred_check
          %p159 = pneg %p60
        $region34: #{tpu_custom_call.1} parent=31 // pred_check_branch
          %161 = sbr.rel (%p159) target = $region36
        $region35: #{tpu_custom_call.1} parent=31 // pred_region
          %163 = dma.done [#allocation3], 5120
        $region36: #{tpu_custom_call.1} parent=31 // pred_fallthru
          _
        %s164 = smul.u32 16, %s18
        %p165 = scmp.lt.s32.totalorder %s164, 31
        %s166 = scalar_select %p165, %s164, 31
        %s167 = smul.addr %s166, 8
        %s168 = scalar_lea.vmem %s0, %s167
        %p169 = pneg %p39
        %p170 = pneg %p36
        %p171 = pneg %p60
        %p172 = pneg %p57
        %p173 = pneg %p81
        %p174 = pneg %p78
        %p175 = pneg %p107
        %p176 = pneg %p104
        %s177 = sand.u32 %s94, 1
        %s178 = scalar_lea.sflag [#allocation4], %s177
        %s179 = sand.u32 %s94, 1
        %s180 = smul.addr %s179, 8
        %s181 = scalar_lea.vmem [#allocation5], %s180
        %s182 = smul.u32 16, %s18
        %p183 = scmp.lt.s32.totalorder %s182, 31
        %s184 = scalar_select %p183, %s182, 31
        %s185 = smul.addr %s184, 8
        %s186 = scalar_lea.vmem %s0, %s185
        %s187 = smul.u32 16, %s18
        %v189 = vld [vmem:[%s186] sm:$0xff]
        %v190 = vld [vmem:[%s186 + $0x8] sm:$0xff]
        %v191 = vld [vmem:[%s186 + $0x10] sm:$0xff]
        %v192 = vld [vmem:[%s186 + $0x18] sm:$0xff]
        %v193 = vld [vmem:[%s186 + $0x20] sm:$0xff]
        %v194 = vld [vmem:[%s186 + $0x28] sm:$0xff]
        %v195 = vld [vmem:[%s186 + $0x30] sm:$0xff]
        %v196 = vld [vmem:[%s186 + $0x38] sm:$0xff]
        %v197 = vld [vmem:[%s186 + $0x40] sm:$0xff]
        %v198 = vld [vmem:[%s186 + $0x48] sm:$0xff]
        %v199 = vld [vmem:[%s186 + $0x50] sm:$0xff]
        %v200 = vld [vmem:[%s186 + $0x58] sm:$0xff]
        %v201 = vld [vmem:[%s186 + $0x60] sm:$0xff]
        %v202 = vld [vmem:[%s186 + $0x68] sm:$0xff]
        %v203 = vld [vmem:[%s186 + $0x70] sm:$0xff]
        %v204 = vld [vmem:[%s186 + $0x78] sm:$0xff]
        %v205 = vpack.c.bf16 %v190, %v189
        %v206 = vpack.c.bf16 %v192, %v191
        %v207 = vpack.c.bf16 %v194, %v193
        %v208 = vpack.c.bf16 %v196, %v195
        %v209 = vpack.c.bf16 %v198, %v197
        %v210 = vpack.c.bf16 %v200, %v199
        %v211 = vpack.c.bf16 %v202, %v201
        %v212 = vpack.c.bf16 %v204, %v203
        %v213 = vld [vmem:[#allocation2] sm:$0xf]
        %v214 = vld [vmem:[#allocation2 + $0x4] sm:$0xf]
        %v215 = vld [vmem:[%s2] sm:$0x1]
        %v217 = vperm.slane %v215, 0
        %v221 = vunpack.c.l.b16 %v213
        %v222 = vunpack.c.l.b16 %v214
        %v223 = vpack.c.b16 %v222, %v221
        %vm225 = vcmask 130048
        %v227 = vsel %vm225, %v205, 0
        %v230 = vsel %vm225, %v206, 0
        %v233 = vsel %vm225, %v207, 0
        %v236 = vsel %vm225, %v208, 0
        %v239 = vsel %vm225, %v209, 0
        %v242 = vsel %vm225, %v210, 0
        %v245 = vsel %vm225, %v211, 0
        %v248 = vsel %vm225, %v212, 0
        %250 = vmatpush.bf16.msra.mxu0 0
        %251 = vmatpush.bf16.msra.mxu0 0
        %252 = vmatpush.bf16.msra.mxu0 0
        %253 = vmatpush.bf16.msra.mxu0 0
        %254 = vmatpush.bf16.msra.mxu0 0
        %255 = vmatpush.bf16.msra.mxu0 0
        %256 = vmatpush.bf16.msra.mxu0 0
        %257 = vmatpush.bf16.msra.mxu0 %v223
        %258 = vmatmul.bf16.gmra.mxu0 %v227
        %v259 = vpop.f32.mrf.mxu0
        %v260 = vadd.f32 %v217, %v259
        %v261 = vpop.f32.mrf.mxu0
        %v262 = vadd.f32 %v217, %v261
        %263 = vmatmul.bf16.gmra.mxu0 %v230
        %v264 = vpop.f32.mrf.mxu0
        %v265 = vadd.f32 %v217, %v264
        %v266 = vpop.f32.mrf.mxu0
        %v267 = vadd.f32 %v217, %v266
        %268 = vmatmul.bf16.gmra.mxu0 %v233
        %v269 = vpop.f32.mrf.mxu0
        %v270 = vadd.f32 %v217, %v269
        %v271 = vpop.f32.mrf.mxu0
        %v272 = vadd.f32 %v217, %v271
        %273 = vmatmul.bf16.gmra.mxu0 %v236
        %v274 = vpop.f32.mrf.mxu0
        %v275 = vadd.f32 %v217, %v274
        %v276 = vpop.f32.mrf.mxu0
        %v277 = vadd.f32 %v217, %v276
        %278 = vmatmul.bf16.gmra.mxu0 %v239
        %v279 = vpop.f32.mrf.mxu0
        %v280 = vadd.f32 %v217, %v279
        %v281 = vpop.f32.mrf.mxu0
        %v282 = vadd.f32 %v217, %v281
        %283 = vmatmul.bf16.gmra.mxu0 %v242
        %v284 = vpop.f32.mrf.mxu0
        %v285 = vadd.f32 %v217, %v284
        %v286 = vpop.f32.mrf.mxu0
        %v287 = vadd.f32 %v217, %v286
        %288 = vmatmul.bf16.gmra.mxu0 %v245
        %v289 = vpop.f32.mrf.mxu0
        %v290 = vadd.f32 %v217, %v289
        %v291 = vpop.f32.mrf.mxu0
        %v292 = vadd.f32 %v217, %v291
        %293 = vmatmul.bf16.gmra.mxu0 %v248
        %v294 = vpop.f32.mrf.mxu0
        %v295 = vadd.f32 %v217, %v294
        %v296 = vpop.f32.mrf.mxu0
        %v297 = vadd.f32 %v217, %v296
        %298 = vdwg.mxu0
        %v299 = vpack.c.bf16 %v260, %v260
        %v300 = vpack.c.bf16 %v262, %v262
        %v301 = vpack.c.bf16 %v265, %v265
        %v302 = vpack.c.bf16 %v267, %v267
        %v303 = vpack.c.bf16 %v270, %v270
        %v304 = vpack.c.bf16 %v272, %v272
        %v305 = vpack.c.bf16 %v275, %v275
        %v306 = vpack.c.bf16 %v277, %v277
        %v307 = vpack.c.bf16 %v280, %v280
        %v308 = vpack.c.bf16 %v282, %v282
        %v309 = vpack.c.bf16 %v285, %v285
        %v310 = vpack.c.bf16 %v287, %v287
        %v311 = vpack.c.bf16 %v290, %v290
        %v312 = vpack.c.bf16 %v292, %v292
        %v313 = vpack.c.bf16 %v295, %v295
        %v314 = vpack.c.bf16 %v297, %v297
        %v315 = vunpack.c.l.bf16 %v299
        %v316 = vunpack.c.l.bf16 %v300
        %v317 = vunpack.c.l.bf16 %v301
        %v318 = vunpack.c.l.bf16 %v302
        %v319 = vunpack.c.l.bf16 %v303
        %v320 = vunpack.c.l.bf16 %v304
        %v321 = vunpack.c.l.bf16 %v305
        %v322 = vunpack.c.l.bf16 %v306
        %v323 = vunpack.c.l.bf16 %v307
        %v324 = vunpack.c.l.bf16 %v308
        %v325 = vunpack.c.l.bf16 %v309
        %v326 = vunpack.c.l.bf16 %v310
        %v327 = vunpack.c.l.bf16 %v311
        %v328 = vunpack.c.l.bf16 %v312
        %v329 = vunpack.c.l.bf16 %v313
        %v330 = vunpack.c.l.bf16 %v314
        %v331 = vmax.f32 %v315, 0.0
        %v332 = vmax.f32 %v316, 0.0
        %v333 = vmax.f32 %v317, 0.0
        %v334 = vmax.f32 %v318, 0.0
        %v335 = vmax.f32 %v319, 0.0
        %v336 = vmax.f32 %v320, 0.0
        %v337 = vmax.f32 %v321, 0.0
        %v338 = vmax.f32 %v322, 0.0
        %v339 = vmax.f32 %v323, 0.0
        %v340 = vmax.f32 %v324, 0.0
        %v341 = vmax.f32 %v325, 0.0
        %v342 = vmax.f32 %v326, 0.0
        %v343 = vmax.f32 %v327, 0.0
        %v344 = vmax.f32 %v328, 0.0
        %v345 = vmax.f32 %v329, 0.0
        %v346 = vmax.f32 %v330, 0.0
        %v347 = vpack.c.bf16 %v332, %v331
        %v348 = vpack.c.bf16 %v334, %v333
        %v349 = vpack.c.bf16 %v336, %v335
        %v350 = vpack.c.bf16 %v338, %v337
        %v351 = vpack.c.bf16 %v340, %v339
        %v352 = vpack.c.bf16 %v342, %v341
        %v353 = vpack.c.bf16 %v344, %v343
        %v354 = vpack.c.bf16 %v346, %v345
        %s355 = scalar_lea.vmem [#allocation2], 64
        %v356 = vld [vmem:[%s355] sm:$0xf]
        %v357 = vld [vmem:[%s355 + $0x4] sm:$0xf]
        %v358 = vld [vmem:[%s355 + $0x8] sm:$0xf]
        %v359 = vld [vmem:[%s355 + $0xc] sm:$0xf]
        %v360 = vld [vmem:[%s355 + $0x10] sm:$0xf]
        %v361 = vld [vmem:[%s355 + $0x14] sm:$0xf]
        %v362 = vld [vmem:[%s355 + $0x18] sm:$0xf]
        %v363 = vld [vmem:[%s355 + $0x1c] sm:$0xf]
        %v364 = vld [vmem:[%s355 + $0x20] sm:$0xf]
        %v365 = vld [vmem:[%s355 + $0x24] sm:$0xf]
        %v366 = vld [vmem:[%s355 + $0x28] sm:$0xf]
        %v367 = vld [vmem:[%s355 + $0x2c] sm:$0xf]
        %v368 = vld [vmem:[%s355 + $0x30] sm:$0xf]
        %v369 = vld [vmem:[%s355 + $0x34] sm:$0xf]
        %v370 = vld [vmem:[%s355 + $0x38] sm:$0xf]
        %v371 = vld [vmem:[%s355 + $0x3c] sm:$0xf]
        %v372 = vld [vmem:[%s2 + $0x1] sm:$0x1]
        %v374 = vperm.slane %v372, 0
        %v392 = vunpack.c.l.b16 %v356
        %v393 = vunpack.c.l.b16 %v357
        %v394 = vunpack.c.l.b16 %v358
        %v395 = vunpack.c.l.b16 %v359
        %v396 = vunpack.c.l.b16 %v360
        %v397 = vunpack.c.l.b16 %v361
        %v398 = vunpack.c.l.b16 %v362
        %v399 = vunpack.c.l.b16 %v363
        %v400 = vunpack.c.l.b16 %v364
        %v401 = vunpack.c.l.b16 %v365
        %v402 = vunpack.c.l.b16 %v366
        %v403 = vunpack.c.l.b16 %v367
        %v404 = vunpack.c.l.b16 %v368
        %v405 = vunpack.c.l.b16 %v369
        %v406 = vunpack.c.l.b16 %v370
        %v407 = vunpack.c.l.b16 %v371
        %v408 = vpack.c.b16 %v393, %v392
        %v409 = vpack.c.b16 %v395, %v394
        %v410 = vpack.c.b16 %v397, %v396
        %v411 = vpack.c.b16 %v399, %v398
        %v412 = vpack.c.b16 %v401, %v400
        %v413 = vpack.c.b16 %v403, %v402
        %v414 = vpack.c.b16 %v405, %v404
        %v415 = vpack.c.b16 %v407, %v406
        %424 = vmatpush.bf16.msra.mxu0 %v415
        %425 = vmatpush.bf16.msra.mxu0 %v414
        %426 = vmatpush.bf16.msra.mxu0 %v413
        %427 = vmatpush.bf16.msra.mxu0 %v412
        %428 = vmatpush.bf16.msra.mxu0 %v411
        %429 = vmatpush.bf16.msra.mxu0 %v410
        %430 = vmatpush.bf16.msra.mxu0 %v409
        %431 = vmatpush.bf16.msra.mxu0 %v408
        %432 = vmatmul.bf16.gmra.mxu0 %v347
        %v433 = vpop.f32.mrf.mxu0
        %v434 = vadd.f32 %v374, %v433
        %v435 = vpop.f32.mrf.mxu0
        %v436 = vadd.f32 %v374, %v435
        %437 = vmatmul.bf16.gmra.mxu0 %v348
        %v438 = vpop.f32.mrf.mxu0
        %v439 = vadd.f32 %v374, %v438
        %v440 = vpop.f32.mrf.mxu0
        %v441 = vadd.f32 %v374, %v440
        %442 = vmatmul.bf16.gmra.mxu0 %v349
        %v443 = vpop.f32.mrf.mxu0
        %v444 = vadd.f32 %v374, %v443
        %v445 = vpop.f32.mrf.mxu0
        %v446 = vadd.f32 %v374, %v445
        %447 = vmatmul.bf16.gmra.mxu0 %v350
        %v448 = vpop.f32.mrf.mxu0
        %v449 = vadd.f32 %v374, %v448
        %v450 = vpop.f32.mrf.mxu0
        %v451 = vadd.f32 %v374, %v450
        %452 = vmatmul.bf16.gmra.mxu0 %v351
        %v453 = vpop.f32.mrf.mxu0
        %v454 = vadd.f32 %v374, %v453
        %v455 = vpop.f32.mrf.mxu0
        %v456 = vadd.f32 %v374, %v455
        %457 = vmatmul.bf16.gmra.mxu0 %v352
        %v458 = vpop.f32.mrf.mxu0
        %v459 = vadd.f32 %v374, %v458
        %v460 = vpop.f32.mrf.mxu0
        %v461 = vadd.f32 %v374, %v460
        %462 = vmatmul.bf16.gmra.mxu0 %v353
        %v463 = vpop.f32.mrf.mxu0
        %v464 = vadd.f32 %v374, %v463
        %v465 = vpop.f32.mrf.mxu0
        %v466 = vadd.f32 %v374, %v465
        %467 = vmatmul.bf16.gmra.mxu0 %v354
        %v468 = vpop.f32.mrf.mxu0
        %v469 = vadd.f32 %v374, %v468
        %v470 = vpop.f32.mrf.mxu0
        %v471 = vadd.f32 %v374, %v470
        %472 = vdwg.mxu0
        %v473 = vpack.c.bf16 %v434, %v434
        %v474 = vpack.c.bf16 %v436, %v436
        %v475 = vpack.c.bf16 %v439, %v439
        %v476 = vpack.c.bf16 %v441, %v441
        %v477 = vpack.c.bf16 %v444, %v444
        %v478 = vpack.c.bf16 %v446, %v446
        %v479 = vpack.c.bf16 %v449, %v449
        %v480 = vpack.c.bf16 %v451, %v451
        %v481 = vpack.c.bf16 %v454, %v454
        %v482 = vpack.c.bf16 %v456, %v456
        %v483 = vpack.c.bf16 %v459, %v459
        %v484 = vpack.c.bf16 %v461, %v461
        %v485 = vpack.c.bf16 %v464, %v464
        %v486 = vpack.c.bf16 %v466, %v466
        %v487 = vpack.c.bf16 %v469, %v469
        %v488 = vpack.c.bf16 %v471, %v471
        %v489 = vunpack.c.l.bf16 %v473
        %v490 = vunpack.c.l.bf16 %v474
        %v491 = vunpack.c.l.bf16 %v475
        %v492 = vunpack.c.l.bf16 %v476
        %v493 = vunpack.c.l.bf16 %v477
        %v494 = vunpack.c.l.bf16 %v478
        %v495 = vunpack.c.l.bf16 %v479
        %v496 = vunpack.c.l.bf16 %v480
        %v497 = vunpack.c.l.bf16 %v481
        %v498 = vunpack.c.l.bf16 %v482
        %v499 = vunpack.c.l.bf16 %v483
        %v500 = vunpack.c.l.bf16 %v484
        %v501 = vunpack.c.l.bf16 %v485
        %v502 = vunpack.c.l.bf16 %v486
        %v503 = vunpack.c.l.bf16 %v487
        %v504 = vunpack.c.l.bf16 %v488
        %v505 = vmax.f32 %v489, 0.0
        %v506 = vmax.f32 %v490, 0.0
        %v507 = vmax.f32 %v491, 0.0
        %v508 = vmax.f32 %v492, 0.0
        %v509 = vmax.f32 %v493, 0.0
        %v510 = vmax.f32 %v494, 0.0
        %v511 = vmax.f32 %v495, 0.0
        %v512 = vmax.f32 %v496, 0.0
        %v513 = vmax.f32 %v497, 0.0
        %v514 = vmax.f32 %v498, 0.0
        %v515 = vmax.f32 %v499, 0.0
        %v516 = vmax.f32 %v500, 0.0
        %v517 = vmax.f32 %v501, 0.0
        %v518 = vmax.f32 %v502, 0.0
        %v519 = vmax.f32 %v503, 0.0
        %v520 = vmax.f32 %v504, 0.0
        %v521 = vpack.c.bf16 %v506, %v505
        %v522 = vpack.c.bf16 %v508, %v507
        %v523 = vpack.c.bf16 %v510, %v509
        %v524 = vpack.c.bf16 %v512, %v511
        %v525 = vpack.c.bf16 %v514, %v513
        %v526 = vpack.c.bf16 %v516, %v515
        %v527 = vpack.c.bf16 %v518, %v517
        %v528 = vpack.c.bf16 %v520, %v519
        %s529 = scalar_lea.vmem [#allocation2], 128
        %v530 = vld [vmem:[%s529] sm:$0xf]
        %v531 = vld [vmem:[%s529 + $0x4] sm:$0xf]
        %v532 = vld [vmem:[%s529 + $0x8] sm:$0xf]
        %v533 = vld [vmem:[%s529 + $0xc] sm:$0xf]
        %v534 = vld [vmem:[%s529 + $0x10] sm:$0xf]
        %v535 = vld [vmem:[%s529 + $0x14] sm:$0xf]
        %v536 = vld [vmem:[%s529 + $0x18] sm:$0xf]
        %v537 = vld [vmem:[%s529 + $0x1c] sm:$0xf]
        %v538 = vld [vmem:[%s529 + $0x20] sm:$0xf]
        %v539 = vld [vmem:[%s529 + $0x24] sm:$0xf]
        %v540 = vld [vmem:[%s529 + $0x28] sm:$0xf]
        %v541 = vld [vmem:[%s529 + $0x2c] sm:$0xf]
        %v542 = vld [vmem:[%s529 + $0x30] sm:$0xf]
        %v543 = vld [vmem:[%s529 + $0x34] sm:$0xf]
        %v544 = vld [vmem:[%s529 + $0x38] sm:$0xf]
        %v545 = vld [vmem:[%s529 + $0x3c] sm:$0xf]
        %v546 = vld [vmem:[%s2 + $0x2] sm:$0x1]
        %v548 = vperm.slane %v546, 0
        %v566 = vunpack.c.l.b16 %v530
        %v567 = vunpack.c.l.b16 %v531
        %v568 = vunpack.c.l.b16 %v532
        %v569 = vunpack.c.l.b16 %v533
        %v570 = vunpack.c.l.b16 %v534
        %v571 = vunpack.c.l.b16 %v535
        %v572 = vunpack.c.l.b16 %v536
        %v573 = vunpack.c.l.b16 %v537
        %v574 = vunpack.c.l.b16 %v538
        %v575 = vunpack.c.l.b16 %v539
        %v576 = vunpack.c.l.b16 %v540
        %v577 = vunpack.c.l.b16 %v541
        %v578 = vunpack.c.l.b16 %v542
        %v579 = vunpack.c.l.b16 %v543
        %v580 = vunpack.c.l.b16 %v544
        %v581 = vunpack.c.l.b16 %v545
        %v582 = vpack.c.b16 %v567, %v566
        %v583 = vpack.c.b16 %v569, %v568
        %v584 = vpack.c.b16 %v571, %v570
        %v585 = vpack.c.b16 %v573, %v572
        %v586 = vpack.c.b16 %v575, %v574
        %v587 = vpack.c.b16 %v577, %v576
        %v588 = vpack.c.b16 %v579, %v578
        %v589 = vpack.c.b16 %v581, %v580
        %598 = vmatpush.bf16.msra.mxu0 %v589
        %599 = vmatpush.bf16.msra.mxu0 %v588
        %600 = vmatpush.bf16.msra.mxu0 %v587
        %601 = vmatpush.bf16.msra.mxu0 %v586
        %602 = vmatpush.bf16.msra.mxu0 %v585
        %603 = vmatpush.bf16.msra.mxu0 %v584
        %604 = vmatpush.bf16.msra.mxu0 %v583
        %605 = vmatpush.bf16.msra.mxu0 %v582
        %606 = vmatmul.bf16.gmra.mxu0 %v521
        %v607 = vpop.f32.mrf.mxu0
        %v608 = vadd.f32 %v548, %v607
        %v609 = vpop.f32.mrf.mxu0
        %v610 = vadd.f32 %v548, %v609
        %611 = vmatmul.bf16.gmra.mxu0 %v522
        %v612 = vpop.f32.mrf.mxu0
        %v613 = vadd.f32 %v548, %v612
        %v614 = vpop.f32.mrf.mxu0
        %v615 = vadd.f32 %v548, %v614
        %616 = vmatmul.bf16.gmra.mxu0 %v523
        %v617 = vpop.f32.mrf.mxu0
        %v618 = vadd.f32 %v548, %v617
        %v619 = vpop.f32.mrf.mxu0
        %v620 = vadd.f32 %v548, %v619
        %621 = vmatmul.bf16.gmra.mxu0 %v524
        %v622 = vpop.f32.mrf.mxu0
        %v623 = vadd.f32 %v548, %v622
        %v624 = vpop.f32.mrf.mxu0
        %v625 = vadd.f32 %v548, %v624
        %626 = vmatmul.bf16.gmra.mxu0 %v525
        %v627 = vpop.f32.mrf.mxu0
        %v628 = vadd.f32 %v548, %v627
        %v629 = vpop.f32.mrf.mxu0
        %v630 = vadd.f32 %v548, %v629
        %631 = vmatmul.bf16.gmra.mxu0 %v526
        %v632 = vpop.f32.mrf.mxu0
        %v633 = vadd.f32 %v548, %v632
        %v634 = vpop.f32.mrf.mxu0
        %v635 = vadd.f32 %v548, %v634
        %636 = vmatmul.bf16.gmra.mxu0 %v527
        %v637 = vpop.f32.mrf.mxu0
        %v638 = vadd.f32 %v548, %v637
        %v639 = vpop.f32.mrf.mxu0
        %v640 = vadd.f32 %v548, %v639
        %641 = vmatmul.bf16.gmra.mxu0 %v528
        %v642 = vpop.f32.mrf.mxu0
        %v643 = vadd.f32 %v548, %v642
        %v644 = vpop.f32.mrf.mxu0
        %v645 = vadd.f32 %v548, %v644
        %646 = vdwg.mxu0
        %v647 = vpack.c.bf16 %v608, %v608
        %v648 = vpack.c.bf16 %v610, %v610
        %v649 = vpack.c.bf16 %v613, %v613
        %v650 = vpack.c.bf16 %v615, %v615
        %v651 = vpack.c.bf16 %v618, %v618
        %v652 = vpack.c.bf16 %v620, %v620
        %v653 = vpack.c.bf16 %v623, %v623
        %v654 = vpack.c.bf16 %v625, %v625
        %v655 = vpack.c.bf16 %v628, %v628
        %v656 = vpack.c.bf16 %v630, %v630
        %v657 = vpack.c.bf16 %v633, %v633
        %v658 = vpack.c.bf16 %v635, %v635
        %v659 = vpack.c.bf16 %v638, %v638
        %v660 = vpack.c.bf16 %v640, %v640
        %v661 = vpack.c.bf16 %v643, %v643
        %v662 = vpack.c.bf16 %v645, %v645
        %v663 = vunpack.c.l.bf16 %v647
        %v664 = vunpack.c.l.bf16 %v648
        %v665 = vunpack.c.l.bf16 %v649
        %v666 = vunpack.c.l.bf16 %v650
        %v667 = vunpack.c.l.bf16 %v651
        %v668 = vunpack.c.l.bf16 %v652
        %v669 = vunpack.c.l.bf16 %v653
        %v670 = vunpack.c.l.bf16 %v654
        %v671 = vunpack.c.l.bf16 %v655
        %v672 = vunpack.c.l.bf16 %v656
        %v673 = vunpack.c.l.bf16 %v657
        %v674 = vunpack.c.l.bf16 %v658
        %v675 = vunpack.c.l.bf16 %v659
        %v676 = vunpack.c.l.bf16 %v660
        %v677 = vunpack.c.l.bf16 %v661
        %v678 = vunpack.c.l.bf16 %v662
        %v679 = vmax.f32 %v663, 0.0
        %v680 = vmax.f32 %v664, 0.0
        %v681 = vmax.f32 %v665, 0.0
        %v682 = vmax.f32 %v666, 0.0
        %v683 = vmax.f32 %v667, 0.0
        %v684 = vmax.f32 %v668, 0.0
        %v685 = vmax.f32 %v669, 0.0
        %v686 = vmax.f32 %v670, 0.0
        %v687 = vmax.f32 %v671, 0.0
        %v688 = vmax.f32 %v672, 0.0
        %v689 = vmax.f32 %v673, 0.0
        %v690 = vmax.f32 %v674, 0.0
        %v691 = vmax.f32 %v675, 0.0
        %v692 = vmax.f32 %v676, 0.0
        %v693 = vmax.f32 %v677, 0.0
        %v694 = vmax.f32 %v678, 0.0
        %v695 = vpack.c.bf16 %v680, %v679
        %v696 = vpack.c.bf16 %v682, %v681
        %v697 = vpack.c.bf16 %v684, %v683
        %v698 = vpack.c.bf16 %v686, %v685
        %v699 = vpack.c.bf16 %v688, %v687
        %v700 = vpack.c.bf16 %v690, %v689
        %v701 = vpack.c.bf16 %v692, %v691
        %v702 = vpack.c.bf16 %v694, %v693
        %s703 = scalar_lea.vmem [#allocation2], 192
        %v704 = vld [vmem:[%s703] sm:$0xf]
        %v705 = vld [vmem:[%s703 + $0x4] sm:$0xf]
        %v706 = vld [vmem:[%s703 + $0x8] sm:$0xf]
        %v707 = vld [vmem:[%s703 + $0xc] sm:$0xf]
        %v708 = vld [vmem:[%s703 + $0x10] sm:$0xf]
        %v709 = vld [vmem:[%s703 + $0x14] sm:$0xf]
        %v710 = vld [vmem:[%s703 + $0x18] sm:$0xf]
        %v711 = vld [vmem:[%s703 + $0x1c] sm:$0xf]
        %v712 = vld [vmem:[%s703 + $0x20] sm:$0xf]
        %v713 = vld [vmem:[%s703 + $0x24] sm:$0xf]
        %v714 = vld [vmem:[%s703 + $0x28] sm:$0xf]
        %v715 = vld [vmem:[%s703 + $0x2c] sm:$0xf]
        %v716 = vld [vmem:[%s703 + $0x30] sm:$0xf]
        %v717 = vld [vmem:[%s703 + $0x34] sm:$0xf]
        %v718 = vld [vmem:[%s703 + $0x38] sm:$0xf]
        %v719 = vld [vmem:[%s703 + $0x3c] sm:$0xf]
        %v720 = vld [vmem:[%s2 + $0x3] sm:$0x1]
        %v722 = vperm.slane %v720, 0
        %v740 = vunpack.c.l.b16 %v704
        %v741 = vunpack.c.l.b16 %v705
        %v742 = vunpack.c.l.b16 %v706
        %v743 = vunpack.c.l.b16 %v707
        %v744 = vunpack.c.l.b16 %v708
        %v745 = vunpack.c.l.b16 %v709
        %v746 = vunpack.c.l.b16 %v710
        %v747 = vunpack.c.l.b16 %v711
        %v748 = vunpack.c.l.b16 %v712
        %v749 = vunpack.c.l.b16 %v713
        %v750 = vunpack.c.l.b16 %v714
        %v751 = vunpack.c.l.b16 %v715
        %v752 = vunpack.c.l.b16 %v716
        %v753 = vunpack.c.l.b16 %v717
        %v754 = vunpack.c.l.b16 %v718
        %v755 = vunpack.c.l.b16 %v719
        %v756 = vpack.c.b16 %v741, %v740
        %v757 = vpack.c.b16 %v743, %v742
        %v758 = vpack.c.b16 %v745, %v744
        %v759 = vpack.c.b16 %v747, %v746
        %v760 = vpack.c.b16 %v749, %v748
        %v761 = vpack.c.b16 %v751, %v750
        %v762 = vpack.c.b16 %v753, %v752
        %v763 = vpack.c.b16 %v755, %v754
        %772 = vmatpush.bf16.msra.mxu0 %v763
        %773 = vmatpush.bf16.msra.mxu0 %v762
        %774 = vmatpush.bf16.msra.mxu0 %v761
        %775 = vmatpush.bf16.msra.mxu0 %v760
        %776 = vmatpush.bf16.msra.mxu0 %v759
        %777 = vmatpush.bf16.msra.mxu0 %v758
        %778 = vmatpush.bf16.msra.mxu0 %v757
        %779 = vmatpush.bf16.msra.mxu0 %v756
        %780 = vmatmul.bf16.gmra.mxu0 %v695
        %v781 = vpop.f32.mrf.mxu0
        %v782 = vadd.f32 %v722, %v781
        %v783 = vpop.f32.mrf.mxu0
        %v784 = vadd.f32 %v722, %v783
        %785 = vmatmul.bf16.gmra.mxu0 %v696
        %v786 = vpop.f32.mrf.mxu0
        %v787 = vadd.f32 %v722, %v786
        %v788 = vpop.f32.mrf.mxu0
        %v789 = vadd.f32 %v722, %v788
        %790 = vmatmul.bf16.gmra.mxu0 %v697
        %v791 = vpop.f32.mrf.mxu0
        %v792 = vadd.f32 %v722, %v791
        %v793 = vpop.f32.mrf.mxu0
        %v794 = vadd.f32 %v722, %v793
        %795 = vmatmul.bf16.gmra.mxu0 %v698
        %v796 = vpop.f32.mrf.mxu0
        %v797 = vadd.f32 %v722, %v796
        %v798 = vpop.f32.mrf.mxu0
        %v799 = vadd.f32 %v722, %v798
        %800 = vmatmul.bf16.gmra.mxu0 %v699
        %v801 = vpop.f32.mrf.mxu0
        %v802 = vadd.f32 %v722, %v801
        %v803 = vpop.f32.mrf.mxu0
        %v804 = vadd.f32 %v722, %v803
        %805 = vmatmul.bf16.gmra.mxu0 %v700
        %v806 = vpop.f32.mrf.mxu0
        %v807 = vadd.f32 %v722, %v806
        %v808 = vpop.f32.mrf.mxu0
        %v809 = vadd.f32 %v722, %v808
        %810 = vmatmul.bf16.gmra.mxu0 %v701
        %v811 = vpop.f32.mrf.mxu0
        %v812 = vadd.f32 %v722, %v811
        %v813 = vpop.f32.mrf.mxu0
        %v814 = vadd.f32 %v722, %v813
        %815 = vmatmul.bf16.gmra.mxu0 %v702
        %v816 = vpop.f32.mrf.mxu0
        %v817 = vadd.f32 %v722, %v816
        %v818 = vpop.f32.mrf.mxu0
        %v819 = vadd.f32 %v722, %v818
        %820 = vdwg.mxu0
        %v821 = vpack.c.bf16 %v782, %v782
        %v822 = vpack.c.bf16 %v784, %v784
        %v823 = vpack.c.bf16 %v787, %v787
        %v824 = vpack.c.bf16 %v789, %v789
        %v825 = vpack.c.bf16 %v792, %v792
        %v826 = vpack.c.bf16 %v794, %v794
        %v827 = vpack.c.bf16 %v797, %v797
        %v828 = vpack.c.bf16 %v799, %v799
        %v829 = vpack.c.bf16 %v802, %v802
        %v830 = vpack.c.bf16 %v804, %v804
        %v831 = vpack.c.bf16 %v807, %v807
        %v832 = vpack.c.bf16 %v809, %v809
        %v833 = vpack.c.bf16 %v812, %v812
        %v834 = vpack.c.bf16 %v814, %v814
        %v835 = vpack.c.bf16 %v817, %v817
        %v836 = vpack.c.bf16 %v819, %v819
        %v837 = vunpack.c.l.bf16 %v821
        %v838 = vunpack.c.l.bf16 %v822
        %v839 = vunpack.c.l.bf16 %v823
        %v840 = vunpack.c.l.bf16 %v824
        %v841 = vunpack.c.l.bf16 %v825
        %v842 = vunpack.c.l.bf16 %v826
        %v843 = vunpack.c.l.bf16 %v827
        %v844 = vunpack.c.l.bf16 %v828
        %v845 = vunpack.c.l.bf16 %v829
        %v846 = vunpack.c.l.bf16 %v830
        %v847 = vunpack.c.l.bf16 %v831
        %v848 = vunpack.c.l.bf16 %v832
        %v849 = vunpack.c.l.bf16 %v833
        %v850 = vunpack.c.l.bf16 %v834
        %v851 = vunpack.c.l.bf16 %v835
        %v852 = vunpack.c.l.bf16 %v836
        %v853 = vmax.f32 %v837, 0.0
        %v854 = vmax.f32 %v838, 0.0
        %v855 = vmax.f32 %v839, 0.0
        %v856 = vmax.f32 %v840, 0.0
        %v857 = vmax.f32 %v841, 0.0
        %v858 = vmax.f32 %v842, 0.0
        %v859 = vmax.f32 %v843, 0.0
        %v860 = vmax.f32 %v844, 0.0
        %v861 = vmax.f32 %v845, 0.0
        %v862 = vmax.f32 %v846, 0.0
        %v863 = vmax.f32 %v847, 0.0
        %v864 = vmax.f32 %v848, 0.0
        %v865 = vmax.f32 %v849, 0.0
        %v866 = vmax.f32 %v850, 0.0
        %v867 = vmax.f32 %v851, 0.0
        %v868 = vmax.f32 %v852, 0.0
        %v869 = vpack.c.bf16 %v854, %v853
        %v870 = vpack.c.bf16 %v856, %v855
        %v871 = vpack.c.bf16 %v858, %v857
        %v872 = vpack.c.bf16 %v860, %v859
        %v873 = vpack.c.bf16 %v862, %v861
        %v874 = vpack.c.bf16 %v864, %v863
        %v875 = vpack.c.bf16 %v866, %v865
        %v876 = vpack.c.bf16 %v868, %v867
        %s877 = scalar_lea.vmem [#allocation2], 256
        %v878 = vld [vmem:[%s877] sm:$0xf]
        %v879 = vld [vmem:[%s877 + $0x4] sm:$0xf]
        %v880 = vld [vmem:[%s877 + $0x8] sm:$0xf]
        %v881 = vld [vmem:[%s877 + $0xc] sm:$0xf]
        %v882 = vld [vmem:[%s877 + $0x10] sm:$0xf]
        %v883 = vld [vmem:[%s877 + $0x14] sm:$0xf]
        %v884 = vld [vmem:[%s877 + $0x18] sm:$0xf]
        %v885 = vld [vmem:[%s877 + $0x1c] sm:$0xf]
        %v886 = vld [vmem:[%s877 + $0x20] sm:$0xf]
        %v887 = vld [vmem:[%s877 + $0x24] sm:$0xf]
        %v888 = vld [vmem:[%s877 + $0x28] sm:$0xf]
        %v889 = vld [vmem:[%s877 + $0x2c] sm:$0xf]
        %v890 = vld [vmem:[%s877 + $0x30] sm:$0xf]
        %v891 = vld [vmem:[%s877 + $0x34] sm:$0xf]
        %v892 = vld [vmem:[%s877 + $0x38] sm:$0xf]
        %v893 = vld [vmem:[%s877 + $0x3c] sm:$0xf]
        %v894 = vld [vmem:[%s2 + $0x4] sm:$0x1]
        %v896 = vperm.slane %v894, 0
        %v914 = vunpack.c.l.b16 %v878
        %v915 = vunpack.c.l.b16 %v879
        %v916 = vunpack.c.l.b16 %v880
        %v917 = vunpack.c.l.b16 %v881
        %v918 = vunpack.c.l.b16 %v882
        %v919 = vunpack.c.l.b16 %v883
        %v920 = vunpack.c.l.b16 %v884
        %v921 = vunpack.c.l.b16 %v885
        %v922 = vunpack.c.l.b16 %v886
        %v923 = vunpack.c.l.b16 %v887
        %v924 = vunpack.c.l.b16 %v888
        %v925 = vunpack.c.l.b16 %v889
        %v926 = vunpack.c.l.b16 %v890
        %v927 = vunpack.c.l.b16 %v891
        %v928 = vunpack.c.l.b16 %v892
        %v929 = vunpack.c.l.b16 %v893
        %v930 = vpack.c.b16 %v915, %v914
        %v931 = vpack.c.b16 %v917, %v916
        %v932 = vpack.c.b16 %v919, %v918
        %v933 = vpack.c.b16 %v921, %v920
        %v934 = vpack.c.b16 %v923, %v922
        %v935 = vpack.c.b16 %v925, %v924
        %v936 = vpack.c.b16 %v927, %v926
        %v937 = vpack.c.b16 %v929, %v928
        %946 = vmatpush.bf16.msra.mxu0 %v937
        %947 = vmatpush.bf16.msra.mxu0 %v936
        %948 = vmatpush.bf16.msra.mxu0 %v935
        %949 = vmatpush.bf16.msra.mxu0 %v934
        %950 = vmatpush.bf16.msra.mxu0 %v933
        %951 = vmatpush.bf16.msra.mxu0 %v932
        %952 = vmatpush.bf16.msra.mxu0 %v931
        %953 = vmatpush.bf16.msra.mxu0 %v930
        %954 = vmatmul.bf16.gmra.mxu0 %v869
        %v955 = vpop.f32.mrf.mxu0
        %v956 = vadd.f32 %v896, %v955
        %v957 = vpop.f32.mrf.mxu0
        %v958 = vadd.f32 %v896, %v957
        %959 = vmatmul.bf16.gmra.mxu0 %v870
        %v960 = vpop.f32.mrf.mxu0
        %v961 = vadd.f32 %v896, %v960
        %v962 = vpop.f32.mrf.mxu0
        %v963 = vadd.f32 %v896, %v962
        %964 = vmatmul.bf16.gmra.mxu0 %v871
        %v965 = vpop.f32.mrf.mxu0
        %v966 = vadd.f32 %v896, %v965
        %v967 = vpop.f32.mrf.mxu0
        %v968 = vadd.f32 %v896, %v967
        %969 = vmatmul.bf16.gmra.mxu0 %v872
        %v970 = vpop.f32.mrf.mxu0
        %v971 = vadd.f32 %v896, %v970
        %v972 = vpop.f32.mrf.mxu0
        %v973 = vadd.f32 %v896, %v972
        %974 = vmatmul.bf16.gmra.mxu0 %v873
        %v975 = vpop.f32.mrf.mxu0
        %v976 = vadd.f32 %v896, %v975
        %v977 = vpop.f32.mrf.mxu0
        %v978 = vadd.f32 %v896, %v977
        %979 = vmatmul.bf16.gmra.mxu0 %v874
        %v980 = vpop.f32.mrf.mxu0
        %v981 = vadd.f32 %v896, %v980
        %v982 = vpop.f32.mrf.mxu0
        %v983 = vadd.f32 %v896, %v982
        %984 = vmatmul.bf16.gmra.mxu0 %v875
        %v985 = vpop.f32.mrf.mxu0
        %v986 = vadd.f32 %v896, %v985
        %v987 = vpop.f32.mrf.mxu0
        %v988 = vadd.f32 %v896, %v987
        %989 = vmatmul.bf16.gmra.mxu0 %v876
        %v990 = vpop.f32.mrf.mxu0
        %v991 = vadd.f32 %v896, %v990
        %v992 = vpop.f32.mrf.mxu0
        %v993 = vadd.f32 %v896, %v992
        %994 = vdwg.mxu0
        %995 = vxpose.xlu0.b32.start [1/16] %v956, 128
        %996 = vxpose.xlu0.b32.cont [2/16] %v958, 128
        %997 = vxpose.xlu0.b32.cont [3/16] %v961, 128
        %998 = vxpose.xlu0.b32.cont [4/16] %v963, 128
        %999 = vxpose.xlu0.b32.cont [5/16] %v966, 128
        %1000 = vxpose.xlu0.b32.cont [6/16] %v968, 128
        %1001 = vxpose.xlu0.b32.cont [7/16] %v971, 128
        %1002 = vxpose.xlu0.b32.cont [8/16] %v973, 128
        %1003 = vxpose.xlu0.b32.cont [9/16] %v976, 128
        %1004 = vxpose.xlu0.b32.cont [10/16] %v978, 128
        %1005 = vxpose.xlu0.b32.cont [11/16] %v981, 128
        %1006 = vxpose.xlu0.b32.cont [12/16] %v983, 128
        %1007 = vxpose.xlu0.b32.cont [13/16] %v986, 128
        %1008 = vxpose.xlu0.b32.cont [14/16] %v988, 128
        %1009 = vxpose.xlu0.b32.cont [15/16] %v991, 128
        %1010 = vxpose.xlu0.b32.end [16/16] %v993, 128
        %v1011 = vpop.trf.xlu0
        %v1012 = vpop.trf.xlu0
        %v1013 = vpop.trf.xlu0
        %v1014 = vpop.trf.xlu0
        %v1015 = vpop.trf.xlu0
        %v1016 = vpop.trf.xlu0
        %v1017 = vpop.trf.xlu0
        %v1018 = vpop.trf.xlu0
        %v1019 = vpop.trf.xlu0
        %v1020 = vpop.trf.xlu0
        %v1021 = vpop.trf.xlu0
        %v1022 = vpop.trf.xlu0
        %v1023 = vpop.trf.xlu0
        %v1024 = vpop.trf.xlu0
        %v1025 = vpop.trf.xlu0
        %v1026 = vpop.trf.xlu0
        %1027 = vst [vmem:[%s181] sm:$0xff] %v1011
        %s1028 = sand.u32 %s94, 1
        %s1029 = scalar_lea.sflag [#allocation4], %s1028
        %s1030 = sand.u32 %s94, 1
        %s1031 = smul.addr %s1030, 8
        %s1032 = scalar_lea.vmem [#allocation5], %s1031
        // Predicated region
        $region37: #{tpu_custom_call.1} parent=31 // pred_check
          %p1033 = pneg %p104
        $region38: #{tpu_custom_call.1} parent=31 // pred_check_branch
          %1035 = sbr.rel (%p1033) target = $region40
        $region39: #{tpu_custom_call.1} parent=31 // pred_region
          %1037 = vsyncadd %s1029, 0
          %s1038 = smul.addr %s18, 8
          %s1039 = scalar_lea.hbm %s3, %s1038
          %s1041 = sshll.u32 %s1032, 4
          %s1042 = int_to_ptr.vmem [resolvable:$true] %s1041
          %s1043 = sshll.u32 %s1039, 4
          %s1044 = int_to_ptr.hbm [resolvable:$true] %s1043
          %1046 = dma.vmem_to_hbm [thread:$0]  %s1042, 128, %s1044, %s1029
        $region40: #{tpu_custom_call.1} parent=31 // pred_fallthru
          _
      $region32: #{tpu_custom_call.1} parent=5 // pred_fallthru
        _
      %p1047 = scmp.le.s32.totalorder 2, %s13
      // Predicated region
      $region41: #{tpu_custom_call.1} parent=5 // pred_check
        %p1048 = pneg %p1047
      $region42: #{tpu_custom_call.1} parent=5 // pred_check_branch
        %1050 = sbr.rel (%p1048) target = $region44
      $region43: #{tpu_custom_call.1} parent=5 // pred_region
        %s1051 = ssub.s32 %s13, 2
        // Predicated region
        $region45: #{tpu_custom_call.1} parent=43 // pred_check
          %p1052 = pneg %p110
        $region46: #{tpu_custom_call.1} parent=43 // pred_check_branch
          %1054 = sbr.rel (%p1052) target = $region48
        $region47: #{tpu_custom_call.1} parent=43 // pred_region
          %s1055 = sand.u32 %s95, 1
          %s1056 = scalar_lea.sflag [#allocation4], %s1055
          %s1057 = sand.u32 %s95, 1
          %s1058 = smul.addr %s1057, 8
          %s1059 = scalar_lea.vmem [#allocation5], %s1058
          %1061 = dma.done %s1056, 128
        $region48: #{tpu_custom_call.1} parent=43 // pred_fallthru
          _
      $region44: #{tpu_custom_call.1} parent=5 // pred_fallthru
        _
    $region6: #{tpu_custom_call.1} parent=1 // loop_footer
      %s17 = sadd.s32 1, %s13
    $region7: #{tpu_custom_call.1} parent=1 // loop_footer_branch
      %12 = sbr.rel target = $region3
    $region8: #{tpu_custom_call.1} parent=1 // loop_exit
      _
    %1062 = vsyncpa [#allocation3], 1
    %s1063 = scalar_lea.sflag [#allocation3], 1
    %1064 = vsyncpa %s1063, 1
    %1065 = vsyncpa [#allocation4], 1
    %s1066 = scalar_lea.sflag [#allocation4], 1
    %1067 = vsyncpa %s1066, 1

</llo_original>
